<compile_context>
chip_gen: v6e
topology: v6e:2x2x1
jax: 0.10.0
libtpu: 0.0.40
codegen_flags: <defaults>
</compile_context>

<pallas_src>
from functools import partial

import jax
import jax.numpy as jnp
from jax.experimental import pallas as pl
from jax.experimental.pallas import tpu as pltpu

_LANE = 128        # TPU lane width; every layer width in this config is <= 128.
_ROW_ALIGN = 16    # row alignment of packed segments (tile-friendly for f32 & bf16)


def _round_up(n, m):
    return ((n + m - 1) // m) * m


def _layout(obs_shape, hidden):
    """Row offsets of each parameter segment inside the packed (R, 128) buffer."""
    h0, h1, h2 = hidden
    assert h0 == _LANE and h1 == _LANE and 2 * h2 <= _LANE
    segs = (("w0", obs_shape), ("w1", h0), ("w2", h1), ("wh1", _LANE), ("wh2", _LANE))
    lay = {}
    r = 0
    for name, rows in segs:
        lay[name] = (r, r + rows)
        r += _round_up(rows, _ROW_ALIGN)
    lay["bias"] = r                   # 16-row bias block: rows 0..4 = b0,b1,b2,bh1,bh2
    r += _ROW_ALIGN
    lay["total"] = r
    return lay


def pack_params(p, *, obs_shape, hidden, action_shape, dtype=jnp.bfloat16):
    """Pack all 14 parameter tensors into ONE (R, 128) buffer (single DMA),
    fusing the dueling-head branches into two lane-dense matmuls."""
    h0, h1, h2 = hidden
    A = action_shape
    lay = _layout(obs_shape, hidden)
    buf = jnp.zeros((lay["total"], _LANE), jnp.float32)

    r0, _ = lay["w0"]
    buf = buf.at[r0:r0 + obs_shape, :h0].set(p["w0"])
    r0, _ = lay["w1"]
    buf = buf.at[r0:r0 + h0, :h1].set(p["w1"])
    r0, _ = lay["w2"]
    buf = buf.at[r0:r0 + h1, :h2].set(p["w2"])
    # Fused dueling stage 1: [wa1 | wv1]; rows >= h2 stay exact zero (they hit
    # exactly-zero lanes of the previous activation).
    r0, _ = lay["wh1"]
    buf = buf.at[r0:r0 + h2, :h2].set(p["wa1"])
    buf = buf.at[r0:r0 + h2, h2:2 * h2].set(p["wv1"])
    # Fused dueling stage 2: block-diagonal [[wa2, 0], [0, wv2]], exact zeros elsewhere.
    r0, _ = lay["wh2"]
    buf = buf.at[r0:r0 + h2, :A].set(p["wa2"])
    buf = buf.at[r0 + h2:r0 + 2 * h2, A:A + 1].set(p["wv2"])
    # Bias block (one row per layer).
    rb = lay["bias"]
    buf = buf.at[rb + 0, :h0].set(p["b0"][0])
    buf = buf.at[rb + 1, :h1].set(p["b1"][0])
    buf = buf.at[rb + 2, :h2].set(p["b2"][0])
    buf = buf.at[rb + 3, :h2].set(p["ba1"][0])
    buf = buf.at[rb + 3, h2:2 * h2].set(p["bv1"][0])
    buf = buf.at[rb + 4, :A].set(p["ba2"][0])
    buf = buf.at[rb + 4, A].set(p["bv2"][0, 0])
    return buf.astype(dtype)


def _make_dqn_kernel(lay, action_shape):
    w0, w1, w2, wh1, wh2 = lay["w0"], lay["w1"], lay["w2"], lay["wh1"], lay["wh2"]
    brow = lay["bias"]
    inv_a = 1.0 / float(action_shape)

    def kernel(x_ref, p_ref, q_ref):
        def mm(a, rng):
            w = p_ref[rng[0]:rng[1], :]                     # static VMEM slice
            return jnp.dot(a.astype(w.dtype), w, preferred_element_type=jnp.float32)

        def bias(i):
            return p_ref[brow + i:brow + i + 1, :].astype(jnp.float32)

        x = x_ref[...]                                      # (TB, obs) f32
        # FCEncoder: 3 x (Linear + ReLU); bias/ReLU in f32 (v5e VPU has no bf16 path).
        h = jnp.maximum(mm(x, w0) + bias(0), 0.0)           # (TB, 128)
        h = jnp.maximum(mm(h, w1) + bias(1), 0.0)           # (TB, 128)
        h = jnp.maximum(mm(h, w2) + bias(2), 0.0)           # (TB, 128), lanes>=h2 exactly 0
        # DuelingHead, fused A/V branches: 2 matmuls instead of 4.
        h = jnp.maximum(mm(h, wh1) + bias(3), 0.0)          # (TB, 128)
        o = mm(h, wh2) + bias(4)                            # lanes [0:A)=adv, lane A=value
        lane = jax.lax.broadcasted_iota(jnp.int32, o.shape, 1)
        a_sum = jnp.sum(jnp.where(lane < action_shape, o, 0.0), axis=-1, keepdims=True)
        v = jnp.sum(jnp.where(lane == action_shape, o, 0.0), axis=-1, keepdims=True)
        # q = advantage - mean(advantage) + value ; valid in lanes [0:A),
        # remaining lanes hold don't-care values and are sliced off in the wrapper
        # (keeps the store fully lane-dense).
        q_ref[...] = o - a_sum * inv_a + v

    return kernel


@partial(jax.jit, static_argnames=("hidden", "action_shape", "batch_tile"))
def dqn_forward(x, packed, *, hidden=(128, 128, 64), action_shape=6, batch_tile=128):
    B, obs = x.shape
    lay = _layout(obs, hidden)
    R = lay["total"]
    assert packed.shape == (R, _LANE), packed.shape

    TB = max(8, min(batch_tile, _round_up(B, 8)))
    TB = _round_up(TB, 8)
    Bp = _round_up(B, TB)
    if Bp != B:
        x = jnp.pad(x, ((0, Bp - B), (0, 0)))

    flops = 2 * Bp * (obs * _LANE + 4 * _LANE * _LANE)
    bytes_accessed = (x.size * x.dtype.itemsize
                      + packed.size * packed.dtype.itemsize
                      + Bp * _LANE * 4)

    q = pl.pallas_call(
        _make_dqn_kernel(lay, action_shape),
        out_shape=jax.ShapeDtypeStruct((Bp, _LANE), jnp.float32),
        grid=(Bp // TB,),
        in_specs=[
            pl.BlockSpec((TB, obs), lambda i: (i, 0)),        # batch tile of x
            pl.BlockSpec((R, _LANE), lambda i: (0, 0)),       # packed params stay resident
        ],
        out_specs=pl.BlockSpec((TB, _LANE), lambda i: (i, 0)),  # lane-dense output
        compiler_params=pltpu.CompilerParams(
            dimension_semantics=("parallel",)),                # v7x: 2nd TC; no-op elsewhere
        cost_estimate=pl.CostEstimate(
            flops=flops, transcendentals=0, bytes_accessed=bytes_accessed),
    )(x, packed)
    return {"logit": q[:B, :action_shape]}


# ----------------------------- parameters / reference -----------------------------

def _init_linear(key, fan_in, fan_out):
    kw, kb = jax.random.split(key)
    bound = 1.0 / jnp.sqrt(jnp.float32(fan_in))
    w = jax.random.uniform(kw, (fan_in, fan_out), jnp.float32, -bound, bound)
    b = jax.random.uniform(kb, (1, fan_out), jnp.float32, -bound, bound)
    return w, b


def init_params(key, obs_shape=32, action_shape=6,
                encoder_hidden_size_list=(128, 128, 64)):
    h0, h1, h2 = encoder_hidden_size_list
    keys = jax.random.split(key, 7)
    p = {}
    p["w0"], p["b0"] = _init_linear(keys[0], obs_shape, h0)
    p["w1"], p["b1"] = _init_linear(keys[1], h0, h1)
    p["w2"], p["b2"] = _init_linear(keys[2], h1, h2)
    p["wa1"], p["ba1"] = _init_linear(keys[3], h2, h2)
    p["wa2"], p["ba2"] = _init_linear(keys[4], h2, action_shape)
    p["wv1"], p["bv1"] = _init_linear(keys[5], h2, h2)
    p["wv2"], p["bv2"] = _init_linear(keys[6], h2, 1)
    return p


def dqn_reference(x, p):
    relu = lambda z: jnp.maximum(z, 0.0)
    h = relu(x @ p["w0"] + p["b0"])
    h = relu(h @ p["w1"] + p["b1"])
    h = relu(h @ p["w2"] + p["b2"])
    a = relu(h @ p["wa1"] + p["ba1"]) @ p["wa2"] + p["ba2"]
    v = relu(h @ p["wv1"] + p["bv1"]) @ p["wv2"] + p["bv2"]
    return a - jnp.mean(a, axis=-1, keepdims=True) + v


if __name__ == "__main__":
    key = jax.random.PRNGKey(0)
    k_param, k_x1, k_x2 = jax.random.split(key, 3)

    OBS, ACT = 32, 6
    HID = (128, 128, 64)
    params = init_params(k_param, obs_shape=OBS, action_shape=ACT,
                         encoder_hidden_size_list=HID)

    # Case 1: module docstring example (B=4), f32 operands, tight check.
    x1 = jax.random.normal(k_x1, (4, OBS), dtype=jnp.float32)
    packed_f32 = pack_params(params, obs_shape=OBS, hidden=HID,
                             action_shape=ACT, dtype=jnp.float32)
    q1 = dqn_forward(x1, packed_f32, hidden=HID, action_shape=ACT)["logit"]
    q1 = jax.block_until_ready(q1)
    ref1 = dqn_reference(x1, params)
    assert q1.shape == (4, ACT), q1.shape
    assert jnp.allclose(q1, ref1, atol=1e-3, rtol=1e-3), \
        float(jnp.max(jnp.abs(q1 - ref1)))

    # Case 2: larger batch with a real batch grid (2 steps) and bf16 matmul operands.
    x2 = jax.random.normal(k_x2, (256, OBS), dtype=jnp.float32)
    packed_bf16 = pack_params(params, obs_shape=OBS, hidden=HID,
                              action_shape=ACT, dtype=jnp.bfloat16)
    q2 = dqn_forward(x2, packed_bf16, hidden=HID, action_shape=ACT,
                     batch_tile=128)["logit"]
    q2 = jax.block_until_ready(q2)
    ref2 = dqn_reference(x2, params)
    assert q2.shape == (256, ACT), q2.shape
    assert jnp.allclose(q2, ref2, atol=5e-2, rtol=5e-2), \
        float(jnp.max(jnp.abs(q2 - ref2)))

    print("KERNEL_OK")
</pallas_src>

<mosaic_0001>
module attributes {stable_mosaic.version = 11 : i64} {
  func.func @kernel(%arg0: i32, %arg1: memref<8x32xf32, #tpu.memory_space<vmem>>, %arg2: memref<560x128xf32, #tpu.memory_space<vmem>>, %arg3: memref<8x128xf32, #tpu.memory_space<vmem>>) attributes {dimension_semantics = [#tpu.dimension_semantics<parallel>], iteration_bounds = array<i64: 1>, scalar_prefetch = 0 : i64, scratch_operands = 0 : i64, tpu.core_type = #tpu.core_type<tc>, window_params = [{transform_indices = @transform_0, window_bounds = array<i64: 8, 32>}, {pipeline_mode = #tpu.pipeline_mode<synchronous>, transform_indices = @transform_1, window_bounds = array<i64: 560, 128>}, {transform_indices = @transform_2, window_bounds = array<i64: 8, 128>}]} {
    %c0 = arith.constant 0 : index
    %c0_0 = arith.constant 0 : index
    %0 = vector.load %arg1[%c0, %c0_0] : memref<8x32xf32, #tpu.memory_space<vmem>>, vector<8x32xf32>
    %c0_1 = arith.constant 0 : index
    %c0_2 = arith.constant 0 : index
    %1 = vector.load %arg2[%c0_1, %c0_2] : memref<560x128xf32, #tpu.memory_space<vmem>>, vector<32x128xf32>
    %cst = arith.constant dense<0.000000e+00> : vector<8x128xf32>
    %2 = tpu.matmul %0, %1, %cst {dimension_numbers = #tpu.dot_dimension_numbers<[1], [0], [0], [1], [0, 0, 1, 1], [], []>} : vector<8x32xf32>, vector<32x128xf32>, vector<8x128xf32> -> vector<8x128xf32>
    %c544 = arith.constant 544 : index
    %c0_3 = arith.constant 0 : index
    %3 = vector.load %arg2[%c544, %c0_3] : memref<560x128xf32, #tpu.memory_space<vmem>>, vector<1x128xf32>
    %4 = vector.broadcast %3 : vector<1x128xf32> to vector<8x128xf32>
    %5 = arith.addf %2, %4 : vector<8x128xf32>
    %cst_4 = arith.constant 0.000000e+00 : f32
    %6 = vector.broadcast %cst_4 : f32 to vector<8x128xf32>
    %7 = arith.maximumf %5, %6 : vector<8x128xf32>
    %c32 = arith.constant 32 : index
    %c0_5 = arith.constant 0 : index
    %8 = vector.load %arg2[%c32, %c0_5] : memref<560x128xf32, #tpu.memory_space<vmem>>, vector<128x128xf32>
    %cst_6 = arith.constant dense<0.000000e+00> : vector<8x128xf32>
    %9 = tpu.matmul %7, %8, %cst_6 {dimension_numbers = #tpu.dot_dimension_numbers<[1], [0], [0], [1], [0, 0, 1, 1], [], []>} : vector<8x128xf32>, vector<128x128xf32>, vector<8x128xf32> -> vector<8x128xf32>
    %c545 = arith.constant 545 : index
    %c0_7 = arith.constant 0 : index
    %10 = vector.load %arg2[%c545, %c0_7] : memref<560x128xf32, #tpu.memory_space<vmem>>, vector<1x128xf32>
    %11 = vector.broadcast %10 : vector<1x128xf32> to vector<8x128xf32>
    %12 = arith.addf %9, %11 : vector<8x128xf32>
    %cst_8 = arith.constant 0.000000e+00 : f32
    %13 = vector.broadcast %cst_8 : f32 to vector<8x128xf32>
    %14 = arith.maximumf %12, %13 : vector<8x128xf32>
    %c160 = arith.constant 160 : index
    %c0_9 = arith.constant 0 : index
    %15 = vector.load %arg2[%c160, %c0_9] : memref<560x128xf32, #tpu.memory_space<vmem>>, vector<128x128xf32>
    %cst_10 = arith.constant dense<0.000000e+00> : vector<8x128xf32>
    %16 = tpu.matmul %14, %15, %cst_10 {dimension_numbers = #tpu.dot_dimension_numbers<[1], [0], [0], [1], [0, 0, 1, 1], [], []>} : vector<8x128xf32>, vector<128x128xf32>, vector<8x128xf32> -> vector<8x128xf32>
    %c546 = arith.constant 546 : index
    %c0_11 = arith.constant 0 : index
    %17 = vector.load %arg2[%c546, %c0_11] : memref<560x128xf32, #tpu.memory_space<vmem>>, vector<1x128xf32>
    %18 = vector.broadcast %17 : vector<1x128xf32> to vector<8x128xf32>
    %19 = arith.addf %16, %18 : vector<8x128xf32>
    %cst_12 = arith.constant 0.000000e+00 : f32
    %20 = vector.broadcast %cst_12 : f32 to vector<8x128xf32>
    %21 = arith.maximumf %19, %20 : vector<8x128xf32>
    %c288 = arith.constant 288 : index
    %c0_13 = arith.constant 0 : index
    %22 = vector.load %arg2[%c288, %c0_13] : memref<560x128xf32, #tpu.memory_space<vmem>>, vector<128x128xf32>
    %cst_14 = arith.constant dense<0.000000e+00> : vector<8x128xf32>
    %23 = tpu.matmul %21, %22, %cst_14 {dimension_numbers = #tpu.dot_dimension_numbers<[1], [0], [0], [1], [0, 0, 1, 1], [], []>} : vector<8x128xf32>, vector<128x128xf32>, vector<8x128xf32> -> vector<8x128xf32>
    %c547 = arith.constant 547 : index
    %c0_15 = arith.constant 0 : index
    %24 = vector.load %arg2[%c547, %c0_15] : memref<560x128xf32, #tpu.memory_space<vmem>>, vector<1x128xf32>
    %25 = vector.broadcast %24 : vector<1x128xf32> to vector<8x128xf32>
    %26 = arith.addf %23, %25 : vector<8x128xf32>
    %cst_16 = arith.constant 0.000000e+00 : f32
    %27 = vector.broadcast %cst_16 : f32 to vector<8x128xf32>
    %28 = arith.maximumf %26, %27 : vector<8x128xf32>
    %c416 = arith.constant 416 : index
    %c0_17 = arith.constant 0 : index
    %29 = vector.load %arg2[%c416, %c0_17] : memref<560x128xf32, #tpu.memory_space<vmem>>, vector<128x128xf32>
    %cst_18 = arith.constant dense<0.000000e+00> : vector<8x128xf32>
    %30 = tpu.matmul %28, %29, %cst_18 {dimension_numbers = #tpu.dot_dimension_numbers<[1], [0], [0], [1], [0, 0, 1, 1], [], []>} : vector<8x128xf32>, vector<128x128xf32>, vector<8x128xf32> -> vector<8x128xf32>
    %c548 = arith.constant 548 : index
    %c0_19 = arith.constant 0 : index
    %31 = vector.load %arg2[%c548, %c0_19] : memref<560x128xf32, #tpu.memory_space<vmem>>, vector<1x128xf32>
    %32 = vector.broadcast %31 : vector<1x128xf32> to vector<8x128xf32>
    %33 = arith.addf %30, %32 : vector<8x128xf32>
    %34 = tpu.iota {dimensions = array<i32: 1>} : vector<8x128xi32>
    %c6_i32 = arith.constant 6 : i32
    %35 = vector.broadcast %c6_i32 : i32 to vector<8x128xi32>
    %36 = arith.cmpi slt, %34, %35 : vector<8x128xi32>
    %cst_20 = arith.constant 0.000000e+00 : f32
    %37 = vector.broadcast %cst_20 : f32 to vector<8x128xf32>
    %38 = arith.select %36, %33, %37 : vector<8x128xi1>, vector<8x128xf32>
    %cst_21 = arith.constant dense<0.000000e+00> : vector<8xf32>
    %39 = vector.multi_reduction <add>, %38, %cst_21 [1] : vector<8x128xf32> to vector<8xf32>
    %40 = vector.shape_cast %39 : vector<8xf32> to vector<8x1xf32>
    %c6_i32_22 = arith.constant 6 : i32
    %41 = vector.broadcast %c6_i32_22 : i32 to vector<8x128xi32>
    %42 = arith.cmpi eq, %34, %41 : vector<8x128xi32>
    %cst_23 = arith.constant 0.000000e+00 : f32
    %43 = vector.broadcast %cst_23 : f32 to vector<8x128xf32>
    %44 = arith.select %42, %33, %43 : vector<8x128xi1>, vector<8x128xf32>
    %cst_24 = arith.constant dense<0.000000e+00> : vector<8xf32>
    %45 = vector.multi_reduction <add>, %44, %cst_24 [1] : vector<8x128xf32> to vector<8xf32>
    %46 = vector.shape_cast %45 : vector<8xf32> to vector<8x1xf32>
    %cst_25 = arith.constant 0.166666672 : f32
    %47 = vector.broadcast %cst_25 : f32 to vector<8x1xf32>
    %48 = arith.mulf %40, %47 : vector<8x1xf32>
    %49 = vector.broadcast %48 : vector<8x1xf32> to vector<8x128xf32>
    %50 = arith.subf %33, %49 : vector<8x128xf32>
    %51 = vector.broadcast %46 : vector<8x1xf32> to vector<8x128xf32>
    %52 = arith.addf %50, %51 : vector<8x128xf32>
    %c0_26 = arith.constant 0 : index
    %c0_27 = arith.constant 0 : index
    %53 = vector.load %arg3[%c0_26, %c0_27] : memref<8x128xf32, #tpu.memory_space<vmem>>, vector<8x128xf32>
    tpu.vector_store %arg3[%c0_26, %c0_27], %52 {strides = array<i32>} : memref<8x128xf32, #tpu.memory_space<vmem>>, vector<8x128xf32>,
    return
  }
  func.func @transform_0(%arg0: i32) -> (i32, i32) {
    %c0_i32 = arith.constant 0 : i32
    %c0_i32_0 = arith.constant 0 : i32
    return %arg0, %c0_i32 : i32, i32
  }
  func.func @transform_1(%arg0: i32) -> (i32, i32) {
    %c0_i32 = arith.constant 0 : i32
    %c0_i32_0 = arith.constant 0 : i32
    %c0_i32_1 = arith.constant 0 : i32
    return %c0_i32, %c0_i32_0 : i32, i32
  }
  func.func @transform_2(%arg0: i32) -> (i32, i32) {
    %c0_i32 = arith.constant 0 : i32
    %c0_i32_0 = arith.constant 0 : i32
    return %arg0, %c0_i32 : i32, i32
  }
}

</mosaic_0001>

<llo_original>
// kernel: dqn_forward.1
$region0: #{dqn_forward.1}
  #allocation0 [shape = 'u32[]', space=smem, size = 0x4, offset = 0x4, fixed_abs, tag = 'smem constant byte address 0x4 - core index']
  #allocation1 [shape = 'u32[144,128]{1,0:T(1,128)}', space=vmem, size = 0x12000, scoped, tag = 'internal scratch']
  %s0 = inlined_call_operand.vmem [shape: f32[8,32], index: 0, kind: input, shape index: {}]
  %s1 = inlined_call_operand.hbm [shape: f32[560,128], index: 1, kind: input, shape index: {}]
  %s2 = inlined_call_operand.vmem [shape: f32[8,128], index: 2, kind: output, shape index: {}]
  %s3 = sld [smem:[#allocation0]]
  $region22: #{dqn_forward.1} parent=0
    _
  %s5 = ssub.s32 1, %s3
  %s6 = scalar_select 0, %s5, %s3
  $region1: #{dqn_forward.1} parent=0
    #allocation2 [shape = 'u8[286720]{0}', space=vmem, size = 0x46000, scoped, tag = 'input window, operand 1, single buffered']
    #allocation3 [shape = 's32[1]{0}', space=sflag, size = 0x4, scoped, tag = 'scoped memory for dqn_forward.1']
    %7 = vsyncpa [#allocation3], 0
    // Predicated region
    $region2: #{dqn_forward.1} parent=1 // pred_check
      _
    $region3: #{dqn_forward.1} parent=1 // pred_check_branch
      %9 = sbr.rel (0) target = $region5
    $region4: #{dqn_forward.1} parent=1 // pred_region
      _
    $region5: #{dqn_forward.1} parent=1 // pred_fallthru
      _
    // Predicated region
    $region6: #{dqn_forward.1} parent=1 // pred_check
      _
    $region7: #{dqn_forward.1} parent=1 // pred_check_branch
      %11 = sbr.rel (0) target = $region9
    $region8: #{dqn_forward.1} parent=1 // pred_region
      %s13 = ssub.s32 8960, 8960
      %14 = vsyncadd [#allocation3], %s13
      %s15 = sshll.u32 [#allocation2], 4
      %s16 = int_to_ptr.vmem [resolvable:$true] %s15
      %21 = dma.hbm_to_vmem [thread:$0]  %s1, 8960, %s16, [#allocation3], 128, 128, 8
    $region9: #{dqn_forward.1} parent=1 // pred_fallthru
      _
    // Predicated region
    $region10: #{dqn_forward.1} parent=1 // pred_check
      _
    $region11: #{dqn_forward.1} parent=1 // pred_check_branch
      %23 = sbr.rel (0) target = $region13
    $region12: #{dqn_forward.1} parent=1 // pred_region
      %24 = dma.done [#allocation3], 8960
    $region13: #{dqn_forward.1} parent=1 // pred_fallthru
      _
    %v25 = vld [vmem:[%s0] sm:$0xff]
    %v26 = vld [vmem:[#allocation2] sm:$0xff]
    %v27 = vld [vmem:[#allocation2 + $0x8] sm:$0xff]
    %v28 = vld [vmem:[#allocation2 + $0x10] sm:$0xff]
    %v29 = vld [vmem:[#allocation2 + $0x18] sm:$0xff]
    %v30 = vld [vmem:[#allocation2 + $0x220] sm:$0x1]
    %v31 = vlaneseq
    %v32 = vshrl.u32 %v31, 7
    %v33 = vsub.s32 0, %v32
    %v34 = vrot.slane %v30, %v33
    %vm35 = vcmask 261120
    %v37 = vsel %vm35, %v25, 0
    %39 = vmatprep.subr.mxu0 0.0
    %40 = vmatpush1.msra.mxu0 0.0
    %41 = vmatprep.subr.mxu0 0.0
    %42 = vmatpush1.msra.mxu0 0.0
    %43 = vmatprep.subr.mxu0 0.0
    %44 = vmatpush1.msra.mxu0 0.0
    %45 = vmatprep.subr.mxu0 0.0
    %46 = vmatpush1.msra.mxu0 0.0
    %47 = vmatprep.subr.mxu0 0.0
    %48 = vmatpush1.msra.mxu0 0.0
    %49 = vmatprep.subr.mxu0 0.0
    %50 = vmatpush1.msra.mxu0 0.0
    %51 = vmatprep.subr.mxu0 0.0
    %52 = vmatpush1.msra.mxu0 0.0
    %53 = vmatprep.subr.mxu0 0.0
    %54 = vmatpush1.msra.mxu0 0.0
    %55 = vmatprep.subr.mxu0 0.0
    %56 = vmatpush1.msra.mxu0 0.0
    %57 = vmatprep.subr.mxu0 0.0
    %58 = vmatpush1.msra.mxu0 0.0
    %59 = vmatprep.subr.mxu0 0.0
    %60 = vmatpush1.msra.mxu0 0.0
    %61 = vmatprep.subr.mxu0 0.0
    %62 = vmatpush1.msra.mxu0 0.0
    %63 = vmatprep.subr.mxu0 0.0
    %64 = vmatpush1.msra.mxu0 %v29
    %65 = vmatprep.subr.mxu0 0.0
    %66 = vmatpush1.msra.mxu0 %v28
    %67 = vmatprep.subr.mxu0 0.0
    %68 = vmatpush1.msra.mxu0 %v27
    %69 = vmatprep.subr.mxu0 0.0
    %70 = vmatpush1.msra.mxu0 %v26
    %71 = vmatprep.subr.mxu0 0.0
    %72 = vmatpush2.msra.mxu0 0.0
    %73 = vmatprep.subr.mxu0 0.0
    %74 = vmatpush2.msra.mxu0 0.0
    %75 = vmatprep.subr.mxu0 0.0
    %76 = vmatpush2.msra.mxu0 0.0
    %77 = vmatprep.subr.mxu0 0.0
    %78 = vmatpush2.msra.mxu0 0.0
    %79 = vmatprep.subr.mxu0 0.0
    %80 = vmatpush2.msra.mxu0 0.0
    %81 = vmatprep.subr.mxu0 0.0
    %82 = vmatpush2.msra.mxu0 0.0
    %83 = vmatprep.subr.mxu0 0.0
    %84 = vmatpush2.msra.mxu0 0.0
    %85 = vmatprep.subr.mxu0 0.0
    %86 = vmatpush2.msra.mxu0 0.0
    %87 = vmatprep.subr.mxu0 0.0
    %88 = vmatpush2.msra.mxu0 0.0
    %89 = vmatprep.subr.mxu0 0.0
    %90 = vmatpush2.msra.mxu0 0.0
    %91 = vmatprep.subr.mxu0 0.0
    %92 = vmatpush2.msra.mxu0 0.0
    %93 = vmatprep.subr.mxu0 0.0
    %94 = vmatpush2.msra.mxu0 0.0
    %95 = vmatprep.subr.mxu0 0.0
    %96 = vmatpush2.msra.mxu0 0.0
    %97 = vmatprep.subr.mxu0 0.0
    %98 = vmatpush2.msra.mxu0 0.0
    %99 = vmatprep.subr.mxu0 0.0
    %100 = vmatpush2.msra.mxu0 0.0
    %101 = vmatprep.subr.mxu0 0.0
    %102 = vmatpush2.msra.mxu0 0.0
    %103 = vmatprep.mubr.f32.mxu0 0.0
    %104 = vmatmul.mubr.f32.gmra.mxu0 %v37
    %v105 = vpop.f32.mrf.mxu0
    %v106 = vadd.f32 %v34, %v105
    %v107 = vpop.f32.mrf.mxu0
    %108 = vdwg.mxu0
    %v109 = vmax.f32 %v106, 0.0
    %v110 = vld [vmem:[#allocation2 + $0x20] sm:$0xff]
    %v111 = vld [vmem:[#allocation2 + $0x28] sm:$0xff]
    %v112 = vld [vmem:[#allocation2 + $0x30] sm:$0xff]
    %v113 = vld [vmem:[#allocation2 + $0x38] sm:$0xff]
    %v114 = vld [vmem:[#allocation2 + $0x40] sm:$0xff]
    %v115 = vld [vmem:[#allocation2 + $0x48] sm:$0xff]
    %v116 = vld [vmem:[#allocation2 + $0x50] sm:$0xff]
    %v117 = vld [vmem:[#allocation2 + $0x58] sm:$0xff]
    %v118 = vld [vmem:[#allocation2 + $0x60] sm:$0xff]
    %v119 = vld [vmem:[#allocation2 + $0x68] sm:$0xff]
    %v120 = vld [vmem:[#allocation2 + $0x70] sm:$0xff]
    %v121 = vld [vmem:[#allocation2 + $0x78] sm:$0xff]
    %v122 = vld [vmem:[#allocation2 + $0x80] sm:$0xff]
    %v123 = vld [vmem:[#allocation2 + $0x88] sm:$0xff]
    %v124 = vld [vmem:[#allocation2 + $0x90] sm:$0xff]
    %v125 = vld [vmem:[#allocation2 + $0x98] sm:$0xff]
    %v126 = vld [vmem:[#allocation2 + $0x221] sm:$0x1]
    %v127 = vlaneseq
    %v128 = vshrl.u32 %v127, 7
    %v129 = vsub.s32 0, %v128
    %v130 = vrot.slane %v126, %v129
    %131 = vmatprep.subr.mxu0 0.0
    %132 = vmatpush1.msra.mxu0 %v125
    %133 = vmatprep.subr.mxu0 0.0
    %134 = vmatpush1.msra.mxu0 %v124
    %135 = vmatprep.subr.mxu0 0.0
    %136 = vmatpush1.msra.mxu0 %v123
    %137 = vmatprep.subr.mxu0 0.0
    %138 = vmatpush1.msra.mxu0 %v122
    %139 = vmatprep.subr.mxu0 0.0
    %140 = vmatpush1.msra.mxu0 %v121
    %141 = vmatprep.subr.mxu0 0.0
    %142 = vmatpush1.msra.mxu0 %v120
    %143 = vmatprep.subr.mxu0 0.0
    %144 = vmatpush1.msra.mxu0 %v119
    %145 = vmatprep.subr.mxu0 0.0
    %146 = vmatpush1.msra.mxu0 %v118
    %147 = vmatprep.subr.mxu0 0.0
    %148 = vmatpush1.msra.mxu0 %v117
    %149 = vmatprep.subr.mxu0 0.0
    %150 = vmatpush1.msra.mxu0 %v116
    %151 = vmatprep.subr.mxu0 0.0
    %152 = vmatpush1.msra.mxu0 %v115
    %153 = vmatprep.subr.mxu0 0.0
    %154 = vmatpush1.msra.mxu0 %v114
    %155 = vmatprep.subr.mxu0 0.0
    %156 = vmatpush1.msra.mxu0 %v113
    %157 = vmatprep.subr.mxu0 0.0
    %158 = vmatpush1.msra.mxu0 %v112
    %159 = vmatprep.subr.mxu0 0.0
    %160 = vmatpush1.msra.mxu0 %v111
    %161 = vmatprep.subr.mxu0 0.0
    %162 = vmatpush1.msra.mxu0 %v110
    %163 = vmatprep.subr.mxu0 0.0
    %164 = vmatpush2.msra.mxu0 0.0
    %165 = vmatprep.subr.mxu0 0.0
    %166 = vmatpush2.msra.mxu0 0.0
    %167 = vmatprep.subr.mxu0 0.0
    %168 = vmatpush2.msra.mxu0 0.0
    %169 = vmatprep.subr.mxu0 0.0
    %170 = vmatpush2.msra.mxu0 0.0
    %171 = vmatprep.subr.mxu0 0.0
    %172 = vmatpush2.msra.mxu0 0.0
    %173 = vmatprep.subr.mxu0 0.0
    %174 = vmatpush2.msra.mxu0 0.0
    %175 = vmatprep.subr.mxu0 0.0
    %176 = vmatpush2.msra.mxu0 0.0
    %177 = vmatprep.subr.mxu0 0.0
    %178 = vmatpush2.msra.mxu0 0.0
    %179 = vmatprep.subr.mxu0 0.0
    %180 = vmatpush2.msra.mxu0 0.0
    %181 = vmatprep.subr.mxu0 0.0
    %182 = vmatpush2.msra.mxu0 0.0
    %183 = vmatprep.subr.mxu0 0.0
    %184 = vmatpush2.msra.mxu0 0.0
    %185 = vmatprep.subr.mxu0 0.0
    %186 = vmatpush2.msra.mxu0 0.0
    %187 = vmatprep.subr.mxu0 0.0
    %188 = vmatpush2.msra.mxu0 0.0
    %189 = vmatprep.subr.mxu0 0.0
    %190 = vmatpush2.msra.mxu0 0.0
    %191 = vmatprep.subr.mxu0 0.0
    %192 = vmatpush2.msra.mxu0 0.0
    %193 = vmatprep.subr.mxu0 0.0
    %194 = vmatpush2.msra.mxu0 0.0
    %195 = vmatprep.mubr.f32.mxu0 0.0
    %196 = vmatmul.mubr.f32.gmra.mxu0 %v109
    %v197 = vpop.f32.mrf.mxu0
    %v198 = vadd.f32 %v130, %v197
    %v199 = vpop.f32.mrf.mxu0
    %200 = vdwg.mxu0
    %v201 = vmax.f32 %v198, 0.0
    %v202 = vld [vmem:[#allocation2 + $0xa0] sm:$0xff]
    %v203 = vld [vmem:[#allocation2 + $0xa8] sm:$0xff]
    %v204 = vld [vmem:[#allocation2 + $0xb0] sm:$0xff]
    %v205 = vld [vmem:[#allocation2 + $0xb8] sm:$0xff]
    %v206 = vld [vmem:[#allocation2 + $0xc0] sm:$0xff]
    %v207 = vld [vmem:[#allocation2 + $0xc8] sm:$0xff]
    %v208 = vld [vmem:[#allocation2 + $0xd0] sm:$0xff]
    %v209 = vld [vmem:[#allocation2 + $0xd8] sm:$0xff]
    %v210 = vld [vmem:[#allocation2 + $0xe0] sm:$0xff]
    %v211 = vld [vmem:[#allocation2 + $0xe8] sm:$0xff]
    %v212 = vld [vmem:[#allocation2 + $0xf0] sm:$0xff]
    %v213 = vld [vmem:[#allocation2 + $0xf8] sm:$0xff]
    %v214 = vld [vmem:[#allocation2 + $0x100] sm:$0xff]
    %v215 = vld [vmem:[#allocation2 + $0x108] sm:$0xff]
    %v216 = vld [vmem:[#allocation2 + $0x110] sm:$0xff]
    %v217 = vld [vmem:[#allocation2 + $0x118] sm:$0xff]
    %v218 = vld [vmem:[#allocation2 + $0x222] sm:$0x1]
    %v219 = vlaneseq
    %v220 = vshrl.u32 %v219, 7
    %v221 = vsub.s32 0, %v220
    %v222 = vrot.slane %v218, %v221
    %223 = vmatprep.subr.mxu0 0.0
    %224 = vmatpush1.msra.mxu0 %v217
    %225 = vmatprep.subr.mxu0 0.0
    %226 = vmatpush1.msra.mxu0 %v216
    %227 = vmatprep.subr.mxu0 0.0
    %228 = vmatpush1.msra.mxu0 %v215
    %229 = vmatprep.subr.mxu0 0.0
    %230 = vmatpush1.msra.mxu0 %v214
    %231 = vmatprep.subr.mxu0 0.0
    %232 = vmatpush1.msra.mxu0 %v213
    %233 = vmatprep.subr.mxu0 0.0
    %234 = vmatpush1.msra.mxu0 %v212
    %235 = vmatprep.subr.mxu0 0.0
    %236 = vmatpush1.msra.mxu0 %v211
    %237 = vmatprep.subr.mxu0 0.0
    %238 = vmatpush1.msra.mxu0 %v210
    %239 = vmatprep.subr.mxu0 0.0
    %240 = vmatpush1.msra.mxu0 %v209
    %241 = vmatprep.subr.mxu0 0.0
    %242 = vmatpush1.msra.mxu0 %v208
    %243 = vmatprep.subr.mxu0 0.0
    %244 = vmatpush1.msra.mxu0 %v207
    %245 = vmatprep.subr.mxu0 0.0
    %246 = vmatpush1.msra.mxu0 %v206
    %247 = vmatprep.subr.mxu0 0.0
    %248 = vmatpush1.msra.mxu0 %v205
    %249 = vmatprep.subr.mxu0 0.0
    %250 = vmatpush1.msra.mxu0 %v204
    %251 = vmatprep.subr.mxu0 0.0
    %252 = vmatpush1.msra.mxu0 %v203
    %253 = vmatprep.subr.mxu0 0.0
    %254 = vmatpush1.msra.mxu0 %v202
    %255 = vmatprep.subr.mxu0 0.0
    %256 = vmatpush2.msra.mxu0 0.0
    %257 = vmatprep.subr.mxu0 0.0
    %258 = vmatpush2.msra.mxu0 0.0
    %259 = vmatprep.subr.mxu0 0.0
    %260 = vmatpush2.msra.mxu0 0.0
    %261 = vmatprep.subr.mxu0 0.0
    %262 = vmatpush2.msra.mxu0 0.0
    %263 = vmatprep.subr.mxu0 0.0
    %264 = vmatpush2.msra.mxu0 0.0
    %265 = vmatprep.subr.mxu0 0.0
    %266 = vmatpush2.msra.mxu0 0.0
    %267 = vmatprep.subr.mxu0 0.0
    %268 = vmatpush2.msra.mxu0 0.0
    %269 = vmatprep.subr.mxu0 0.0
    %270 = vmatpush2.msra.mxu0 0.0
    %271 = vmatprep.subr.mxu0 0.0
    %272 = vmatpush2.msra.mxu0 0.0
    %273 = vmatprep.subr.mxu0 0.0
    %274 = vmatpush2.msra.mxu0 0.0
    %275 = vmatprep.subr.mxu0 0.0
    %276 = vmatpush2.msra.mxu0 0.0
    %277 = vmatprep.subr.mxu0 0.0
    %278 = vmatpush2.msra.mxu0 0.0
    %279 = vmatprep.subr.mxu0 0.0
    %280 = vmatpush2.msra.mxu0 0.0
    %281 = vmatprep.subr.mxu0 0.0
    %282 = vmatpush2.msra.mxu0 0.0
    %283 = vmatprep.subr.mxu0 0.0
    %284 = vmatpush2.msra.mxu0 0.0
    %285 = vmatprep.subr.mxu0 0.0
    %286 = vmatpush2.msra.mxu0 0.0
    %287 = vmatprep.mubr.f32.mxu0 0.0
    %288 = vmatmul.mubr.f32.gmra.mxu0 %v201
    %v289 = vpop.f32.mrf.mxu0
    %v290 = vadd.f32 %v222, %v289
    %v291 = vpop.f32.mrf.mxu0
    %292 = vdwg.mxu0
    %v293 = vmax.f32 %v290, 0.0
    %v294 = vld [vmem:[#allocation2 + $0x120] sm:$0xff]
    %v295 = vld [vmem:[#allocation2 + $0x128] sm:$0xff]
    %v296 = vld [vmem:[#allocation2 + $0x130] sm:$0xff]
    %v297 = vld [vmem:[#allocation2 + $0x138] sm:$0xff]
    %v298 = vld [vmem:[#allocation2 + $0x140] sm:$0xff]
    %v299 = vld [vmem:[#allocation2 + $0x148] sm:$0xff]
    %v300 = vld [vmem:[#allocation2 + $0x150] sm:$0xff]
    %v301 = vld [vmem:[#allocation2 + $0x158] sm:$0xff]
    %v302 = vld [vmem:[#allocation2 + $0x160] sm:$0xff]
    %v303 = vld [vmem:[#allocation2 + $0x168] sm:$0xff]
    %v304 = vld [vmem:[#allocation2 + $0x170] sm:$0xff]
    %v305 = vld [vmem:[#allocation2 + $0x178] sm:$0xff]
    %v306 = vld [vmem:[#allocation2 + $0x180] sm:$0xff]
    %v307 = vld [vmem:[#allocation2 + $0x188] sm:$0xff]
    %v308 = vld [vmem:[#allocation2 + $0x190] sm:$0xff]
    %v309 = vld [vmem:[#allocation2 + $0x198] sm:$0xff]
    %v310 = vld [vmem:[#allocation2 + $0x223] sm:$0x1]
    %v311 = vlaneseq
    %v312 = vshrl.u32 %v311, 7
    %v313 = vsub.s32 0, %v312
    %v314 = vrot.slane %v310, %v313
    %315 = vmatprep.subr.mxu0 0.0
    %316 = vmatpush1.msra.mxu0 %v309
    %317 = vmatprep.subr.mxu0 0.0
    %318 = vmatpush1.msra.mxu0 %v308
    %319 = vmatprep.subr.mxu0 0.0
    %320 = vmatpush1.msra.mxu0 %v307
    %321 = vmatprep.subr.mxu0 0.0
    %322 = vmatpush1.msra.mxu0 %v306
    %323 = vmatprep.subr.mxu0 0.0
    %324 = vmatpush1.msra.mxu0 %v305
    %325 = vmatprep.subr.mxu0 0.0
    %326 = vmatpush1.msra.mxu0 %v304
    %327 = vmatprep.subr.mxu0 0.0
    %328 = vmatpush1.msra.mxu0 %v303
    %329 = vmatprep.subr.mxu0 0.0
    %330 = vmatpush1.msra.mxu0 %v302
    %331 = vmatprep.subr.mxu0 0.0
    %332 = vmatpush1.msra.mxu0 %v301
    %333 = vmatprep.subr.mxu0 0.0
    %334 = vmatpush1.msra.mxu0 %v300
    %335 = vmatprep.subr.mxu0 0.0
    %336 = vmatpush1.msra.mxu0 %v299
    %337 = vmatprep.subr.mxu0 0.0
    %338 = vmatpush1.msra.mxu0 %v298
    %339 = vmatprep.subr.mxu0 0.0
    %340 = vmatpush1.msra.mxu0 %v297
    %341 = vmatprep.subr.mxu0 0.0
    %342 = vmatpush1.msra.mxu0 %v296
    %343 = vmatprep.subr.mxu0 0.0
    %344 = vmatpush1.msra.mxu0 %v295
    %345 = vmatprep.subr.mxu0 0.0
    %346 = vmatpush1.msra.mxu0 %v294
    %347 = vmatprep.subr.mxu0 0.0
    %348 = vmatpush2.msra.mxu0 0.0
    %349 = vmatprep.subr.mxu0 0.0
    %350 = vmatpush2.msra.mxu0 0.0
    %351 = vmatprep.subr.mxu0 0.0
    %352 = vmatpush2.msra.mxu0 0.0
    %353 = vmatprep.subr.mxu0 0.0
    %354 = vmatpush2.msra.mxu0 0.0
    %355 = vmatprep.subr.mxu0 0.0
    %356 = vmatpush2.msra.mxu0 0.0
    %357 = vmatprep.subr.mxu0 0.0
    %358 = vmatpush2.msra.mxu0 0.0
    %359 = vmatprep.subr.mxu0 0.0
    %360 = vmatpush2.msra.mxu0 0.0
    %361 = vmatprep.subr.mxu0 0.0
    %362 = vmatpush2.msra.mxu0 0.0
    %363 = vmatprep.subr.mxu0 0.0
    %364 = vmatpush2.msra.mxu0 0.0
    %365 = vmatprep.subr.mxu0 0.0
    %366 = vmatpush2.msra.mxu0 0.0
    %367 = vmatprep.subr.mxu0 0.0
    %368 = vmatpush2.msra.mxu0 0.0
    %369 = vmatprep.subr.mxu0 0.0
    %370 = vmatpush2.msra.mxu0 0.0
    %371 = vmatprep.subr.mxu0 0.0
    %372 = vmatpush2.msra.mxu0 0.0
    %373 = vmatprep.subr.mxu0 0.0
    %374 = vmatpush2.msra.mxu0 0.0
    %375 = vmatprep.subr.mxu0 0.0
    %376 = vmatpush2.msra.mxu0 0.0
    %377 = vmatprep.subr.mxu0 0.0
    %378 = vmatpush2.msra.mxu0 0.0
    %379 = vmatprep.mubr.f32.mxu0 0.0
    %380 = vmatmul.mubr.f32.gmra.mxu0 %v293
    %v381 = vpop.f32.mrf.mxu0
    %v382 = vadd.f32 %v314, %v381
    %v383 = vpop.f32.mrf.mxu0
    %384 = vdwg.mxu0
    %v385 = vmax.f32 %v382, 0.0
    %v386 = vld [vmem:[#allocation2 + $0x1a0] sm:$0xff]
    %v387 = vld [vmem:[#allocation2 + $0x1a8] sm:$0xff]
    %v388 = vld [vmem:[#allocation2 + $0x1b0] sm:$0xff]
    %v389 = vld [vmem:[#allocation2 + $0x1b8] sm:$0xff]
    %v390 = vld [vmem:[#allocation2 + $0x1c0] sm:$0xff]
    %v391 = vld [vmem:[#allocation2 + $0x1c8] sm:$0xff]
    %v392 = vld [vmem:[#allocation2 + $0x1d0] sm:$0xff]
    %v393 = vld [vmem:[#allocation2 + $0x1d8] sm:$0xff]
    %v394 = vld [vmem:[#allocation2 + $0x1e0] sm:$0xff]
    %v395 = vld [vmem:[#allocation2 + $0x1e8] sm:$0xff]
    %v396 = vld [vmem:[#allocation2 + $0x1f0] sm:$0xff]
    %v397 = vld [vmem:[#allocation2 + $0x1f8] sm:$0xff]
    %v398 = vld [vmem:[#allocation2 + $0x200] sm:$0xff]
    %v399 = vld [vmem:[#allocation2 + $0x208] sm:$0xff]
    %v400 = vld [vmem:[#allocation2 + $0x210] sm:$0xff]
    %v401 = vld [vmem:[#allocation2 + $0x218] sm:$0xff]
    %v402 = vld [vmem:[#allocation2 + $0x224] sm:$0x1]
    %v403 = vlaneseq
    %v404 = vshrl.u32 %v403, 7
    %v405 = vsub.s32 0, %v404
    %v406 = vrot.slane %v402, %v405
    %407 = vmatprep.subr.mxu0 0.0
    %408 = vmatpush1.msra.mxu0 %v401
    %409 = vmatprep.subr.mxu0 0.0
    %410 = vmatpush1.msra.mxu0 %v400
    %411 = vmatprep.subr.mxu0 0.0
    %412 = vmatpush1.msra.mxu0 %v399
    %413 = vmatprep.subr.mxu0 0.0
    %414 = vmatpush1.msra.mxu0 %v398
    %415 = vmatprep.subr.mxu0 0.0
    %416 = vmatpush1.msra.mxu0 %v397
    %417 = vmatprep.subr.mxu0 0.0
    %418 = vmatpush1.msra.mxu0 %v396
    %419 = vmatprep.subr.mxu0 0.0
    %420 = vmatpush1.msra.mxu0 %v395
    %421 = vmatprep.subr.mxu0 0.0
    %422 = vmatpush1.msra.mxu0 %v394
    %423 = vmatprep.subr.mxu0 0.0
    %424 = vmatpush1.msra.mxu0 %v393
    %425 = vmatprep.subr.mxu0 0.0
    %426 = vmatpush1.msra.mxu0 %v392
    %427 = vmatprep.subr.mxu0 0.0
    %428 = vmatpush1.msra.mxu0 %v391
    %429 = vmatprep.subr.mxu0 0.0
    %430 = vmatpush1.msra.mxu0 %v390
    %431 = vmatprep.subr.mxu0 0.0
    %432 = vmatpush1.msra.mxu0 %v389
    %433 = vmatprep.subr.mxu0 0.0
    %434 = vmatpush1.msra.mxu0 %v388
    %435 = vmatprep.subr.mxu0 0.0
    %436 = vmatpush1.msra.mxu0 %v387
    %437 = vmatprep.subr.mxu0 0.0
    %438 = vmatpush1.msra.mxu0 %v386
    %439 = vmatprep.subr.mxu0 0.0
    %440 = vmatpush2.msra.mxu0 0.0
    %441 = vmatprep.subr.mxu0 0.0
    %442 = vmatpush2.msra.mxu0 0.0
    %443 = vmatprep.subr.mxu0 0.0
    %444 = vmatpush2.msra.mxu0 0.0
    %445 = vmatprep.subr.mxu0 0.0
    %446 = vmatpush2.msra.mxu0 0.0
    %447 = vmatprep.subr.mxu0 0.0
    %448 = vmatpush2.msra.mxu0 0.0
    %449 = vmatprep.subr.mxu0 0.0
    %450 = vmatpush2.msra.mxu0 0.0
    %451 = vmatprep.subr.mxu0 0.0
    %452 = vmatpush2.msra.mxu0 0.0
    %453 = vmatprep.subr.mxu0 0.0
    %454 = vmatpush2.msra.mxu0 0.0
    %455 = vmatprep.subr.mxu0 0.0
    %456 = vmatpush2.msra.mxu0 0.0
    %457 = vmatprep.subr.mxu0 0.0
    %458 = vmatpush2.msra.mxu0 0.0
    %459 = vmatprep.subr.mxu0 0.0
    %460 = vmatpush2.msra.mxu0 0.0
    %461 = vmatprep.subr.mxu0 0.0
    %462 = vmatpush2.msra.mxu0 0.0
    %463 = vmatprep.subr.mxu0 0.0
    %464 = vmatpush2.msra.mxu0 0.0
    %465 = vmatprep.subr.mxu0 0.0
    %466 = vmatpush2.msra.mxu0 0.0
    %467 = vmatprep.subr.mxu0 0.0
    %468 = vmatpush2.msra.mxu0 0.0
    %469 = vmatprep.subr.mxu0 0.0
    %470 = vmatpush2.msra.mxu0 0.0
    %471 = vmatprep.mubr.f32.mxu0 0.0
    %472 = vmatmul.mubr.f32.gmra.mxu0 %v385
    %v473 = vpop.f32.mrf.mxu0
    %v474 = vadd.f32 %v406, %v473
    %v475 = vpop.f32.mrf.mxu0
    %476 = vdwg.mxu0
    %v477 = vlaneseq
    %v478 = vand.u32 %v477, 127
    %vm479 = vcmp.lt.s32.totalorder %v478, 6
    %v480 = vsel %vm479, %v474, 0.0
    %481 = vadd.xlane.f32.xlu0 %v480
    %v482 = vpop.xlane.xlu0 %481
    %vm483 = vcmp.eq.s32.totalorder %v478, 6
    %v484 = vsel %vm483, %v474, 0.0
    %485 = vadd.xlane.f32.xlu0 %v484
    %v486 = vpop.xlane.xlu0 %485
    %v487 = vmul.f32 %v482, 0.16666667
    %v488 = vsub.f32 %v474, %v487
    %v489 = vadd.f32 %v488, %v486
    %490 = vst [vmem:[%s2] sm:$0xff] %v489
    // Predicated region
    $region14: #{dqn_forward.1} parent=1 // pred_check
      _
    $region15: #{dqn_forward.1} parent=1 // pred_check_branch
      %492 = sbr.rel (0) target = $region17
    $region16: #{dqn_forward.1} parent=1 // pred_region
      _
    $region17: #{dqn_forward.1} parent=1 // pred_fallthru
      _
    // Predicated region
    $region18: #{dqn_forward.1} parent=1 // pred_check
      _
    $region19: #{dqn_forward.1} parent=1 // pred_check_branch
      %494 = sbr.rel (0) target = $region21
    $region20: #{dqn_forward.1} parent=1 // pred_region
      _
    $region21: #{dqn_forward.1} parent=1 // pred_fallthru
      _
    %495 = vsyncpa [#allocation3], 1

</llo_original>
